<compile_context>
chip_gen: v7x
topology: tpu7x:2x2x1
jax: 0.10.0
libtpu: 0.0.40
codegen_flags: <defaults>
</compile_context>

<pallas_src>
import numpy as np
import jax
import jax.numpy as jnp
from jax.experimental import pallas as pl
from jax.experimental.pallas import tpu as pltpu

# ----------------- configuration (small shapes implied by the module) -------
CLASS_SIZE = 5
EMBED_DIM = 32
VOCAB_SIZE = 100
POS_VOCAB = 20          # rows of pos_embedder.embeddings
POS_DIM = 8             # pos_embedder.embeddings.shape[1]
FEATURE_LENGTHS = np.array([8, 1, 1])          # text feature + 2 entity features
TEXT_COL = int(FEATURE_LENGTHS.argmax(axis=0))
SEQ_LEN = int(FEATURE_LENGTHS[TEXT_COL])
BATCH = 2
WINDOW_SIZES = [3, 2, 1]                       # self.windows_sizes
TOTAL_DIM = EMBED_DIM + (len(FEATURE_LENGTHS) - 1) * POS_DIM
FC_SIZE = 100


def _round_up(x, m):
    return -(-x // m) * m


def _branch_out_len(S, k):
    # AvgPool2d(kernel=(1,k), stride=1, pad=0) then Conv1d(kernel=k, stride=1, pad=k//2)
    pad = k // 2
    lp = S - k + 1
    return lp + 2 * pad - k + 1


BRANCH_LENS = [_branch_out_len(SEQ_LEN, k) for k in WINDOW_SIZES]   # [6, 8, 8]
TOTAL_CNN_OUT = sum(BRANCH_LENS)                                    # 22

DS = SEQ_LEN * TOTAL_DIM                 # 384 (flattened activation width)
DS_PAD = _round_up(DS, 128)              # 384
CAT_PAD = _round_up(TOTAL_CNN_OUT, 128)  # 128
FC_PAD = _round_up(FC_SIZE, 128)         # 128
OUT_PAD = _round_up(CLASS_SIZE, 128)     # 128


# ----------------------------- Pallas kernel --------------------------------
def relcnn_kernel(x_ref, wc_ref, bc_ref, w1_ref, b1_ref, w2_ref, b2_ref, o_ref):
    # Stage 1: fused AvgPool + Conv1d (all 3 window sizes) as one bf16 MXU
    #          matmul with f32 accumulation; bias + ReLU in f32 on the VPU.
    #          (Dropout = identity in eval.)
    cat = jnp.dot(x_ref[...], wc_ref[...], preferred_element_type=jnp.float32)
    cat = jnp.maximum(cat + bc_ref[...], 0.0)                 # [TB, CAT_PAD] f32
    # Stage 2: fc1 + ReLU (cast back to bf16 for the native MXU path).
    h = jnp.dot(cat.astype(jnp.bfloat16), w1_ref[...],
                preferred_element_type=jnp.float32)
    h = jnp.maximum(h + b1_ref[...], 0.0)                     # [TB, FC_PAD] f32
    # Stage 3: fc2 logits (padded lanes are exact zeros).
    o_ref[...] = jnp.dot(h.astype(jnp.bfloat16), w2_ref[...],
                         preferred_element_type=jnp.float32) + b2_ref[...]


# ~0.35 us fixed per-grid-step pipeline overhead, expressed in "rows of DMA"
# (bf16 input row 768 B + f32 output row 512 B ~ 1 ns/row at ~1.3 TB/s).
_STEP_OVERHEAD_ROWS = 384


def _pick_batch_tile(b):
    """Pick a batch tile (multiple of 16 for bf16 sublane packing).

    Cost model per candidate: nsteps * max(step_overhead, tile_rows).  Padded
    rows inflate the tile / step count and are therefore charged at full DMA
    cost whenever the tile is above the overhead floor, i.e. the choice is
    padding-aware exactly where padding costs real time.  Ties prefer >=2 grid
    steps (v7x megacore) and then the least padding.
    """
    best_tb, best_key = 16, None
    for tb in (2048, 1024, 512, 256, 128, 64, 32, 16):
        bp = _round_up(b, tb)
        nsteps = bp // tb
        cost = nsteps * max(_STEP_OVERHEAD_ROWS, tb)
        key = (cost, 0 if nsteps >= 2 else 1, bp - b, -tb)
        if best_key is None or key < best_key:
            best_key, best_tb = key, tb
    # v7x has 2 TensorCores: guarantee >=2 "parallel" grid steps whenever the
    # tile is large enough to split; harmless on single-TC v5e/v6e.
    if _round_up(b, best_tb) // best_tb == 1 and best_tb >= 32:
        best_tb //= 2
    return best_tb


def relcnn_pallas(x_flat, kp):
    b = x_flat.shape[0]
    tb = _pick_batch_tile(b)
    bp = _round_up(b, tb)
    if bp != b:
        x_flat = jnp.pad(x_flat, ((0, bp - b), (0, 0)))
    grid = (bp // tb,)

    # Grid-invariant operands (constant index_map): single buffer, no swap.
    const = dict(pipeline_mode=pl.Buffered(1))

    out = pl.pallas_call(
        relcnn_kernel,
        out_shape=jax.ShapeDtypeStruct((bp, OUT_PAD), jnp.float32),
        grid_spec=pltpu.PrefetchScalarGridSpec(
            num_scalar_prefetch=0,
            grid=grid,
            in_specs=[
                pl.BlockSpec((tb, DS_PAD), lambda i: (i, 0)),                 # activations (bf16)
                pl.BlockSpec((DS_PAD, CAT_PAD), lambda i: (0, 0), **const),   # W_comb (bf16)
                pl.BlockSpec((1, CAT_PAD), lambda i: (0, 0), **const),        # b_comb (f32)
                pl.BlockSpec((CAT_PAD, FC_PAD), lambda i: (0, 0), **const),   # fc1 W (bf16)
                pl.BlockSpec((1, FC_PAD), lambda i: (0, 0), **const),         # fc1 b (f32)
                pl.BlockSpec((FC_PAD, OUT_PAD), lambda i: (0, 0), **const),   # fc2 W (bf16)
                pl.BlockSpec((1, OUT_PAD), lambda i: (0, 0), **const),        # fc2 b (f32)
            ],
            out_specs=pl.BlockSpec((tb, OUT_PAD), lambda i: (i, 0)),
        ),
        compiler_params=pltpu.CompilerParams(
            dimension_semantics=("parallel",),      # shards batch across TCs on v7x
            # <6 MiB used even at TB=2048 bf16 double-buffered; 32 MiB is safe
            # on every generation including v7x's 64 MiB physical VMEM.
            vmem_limit_bytes=32 * 1024 * 1024),
    )(x_flat, kp["wc"], kp["bc"], kp["fc1w"], kp["fc1b"], kp["fc2w"], kp["fc2b"])
    return out[:b, :CLASS_SIZE]


# ---------------------- host-side weight precompute --------------------------
def build_kernel_params(params):
    """Fold AvgPool+Conv1d into one weight; pad to lane multiples; cast bf16."""
    S, D = SEQ_LEN, TOTAL_DIM

    def branch_lin(x_sd, k, w):
        # x_sd: [S, D] single example, bias excluded (pure linear map).
        x = x_sd.T                                   # [D, S] (NCW view)
        lp = S - k + 1
        pooled = x[:, 0:lp]
        for j in range(1, k):
            pooled = pooled + x[:, j:j + lp]
        pooled = pooled * (1.0 / k)
        pad = k // 2
        padded = jnp.pad(pooled, ((0, 0), (pad, pad))) if pad else pooled
        lc = lp + 2 * pad - k + 1
        out = jnp.zeros((lc,), jnp.float32)
        for j in range(k):
            out = out + jnp.sum(padded[:, j:j + lc] * w[:, j][:, None], axis=0)
        return out

    def all_branches(x_flat_row):
        x_sd = x_flat_row.reshape(S, D)
        return jnp.concatenate([
            branch_lin(x_sd, 3, params["conv_w3"]),
            branch_lin(x_sd, 2, params["conv_w2"]),
            branch_lin(x_sd, 1, params["conv_w1"]),
        ])

    # Push the identity basis through the (linear) pool+conv path once.
    w_comb = jax.vmap(all_branches)(jnp.eye(S * D, dtype=jnp.float32))  # [DS, 22]
    b_comb = jnp.concatenate([
        jnp.full((BRANCH_LENS[0],), params["conv_b"][0], jnp.float32),
        jnp.full((BRANCH_LENS[1],), params["conv_b"][1], jnp.float32),
        jnp.full((BRANCH_LENS[2],), params["conv_b"][2], jnp.float32),
    ])

    wc = (jnp.zeros((DS_PAD, CAT_PAD), jnp.float32)
          .at[:DS, :TOTAL_CNN_OUT].set(w_comb).astype(jnp.bfloat16))
    bc = jnp.zeros((1, CAT_PAD), jnp.float32).at[0, :TOTAL_CNN_OUT].set(b_comb)
    fc1w = (jnp.zeros((CAT_PAD, FC_PAD), jnp.float32)
            .at[:TOTAL_CNN_OUT, :FC_SIZE].set(params["fc1_w"]).astype(jnp.bfloat16))
    fc1b = jnp.zeros((1, FC_PAD), jnp.float32).at[:, :FC_SIZE].set(params["fc1_b"])
    fc2w = (jnp.zeros((FC_PAD, OUT_PAD), jnp.float32)
            .at[:FC_SIZE, :CLASS_SIZE].set(params["fc2_w"]).astype(jnp.bfloat16))
    fc2b = jnp.zeros((1, OUT_PAD), jnp.float32).at[:, :CLASS_SIZE].set(params["fc2_b"])
    return {"wc": wc, "bc": bc, "fc1w": fc1w, "fc1b": fc1b, "fc2w": fc2w, "fc2b": fc2b}


# ------------------------------ JAX glue -------------------------------------
def pos_embed_lookup(text_b, entity_token, pos_table):
    # TODO(synk): deterministic PositionEmbedder stand-in (distance of each
    # token to the first occurrence of the entity token, clipped); the original
    # external PositionEmbedder class is not part of this module.
    S = text_b.shape[0]
    idxs = jnp.arange(S, dtype=jnp.int32)
    match = text_b == entity_token
    pos = jnp.min(jnp.where(match, idxs, S))
    pos = jnp.where(pos == S, 0, pos)
    rel = jnp.clip(jnp.abs(idxs - pos), 0, pos_table.shape[0] - 1)
    return pos_table[rel]                                  # [S, POS_DIM]


def build_merged(feature_tuples, params):
    text_t = feature_tuples[TEXT_COL].T                    # [B, S]
    emb = params["embed"][text_t]                          # [B, S, E]
    merged = [emb]
    for f in range(len(feature_tuples)):
        if f == TEXT_COL:
            continue
        ent = feature_tuples[f].T                          # [B, 1]
        pe = jax.vmap(lambda t, e: pos_embed_lookup(t, e, params["pos_embed"]))(
            text_t, ent[:, 0])                             # [B, S, POS_DIM]
        merged.append(pe)
    return jnp.concatenate(merged, axis=2)                 # [B, S, TOTAL_DIM]


def forward(feature_tuples, params, kparams):
    merged = build_merged(feature_tuples, params)          # [B, S, D] lane-dense
    b = merged.shape[0]
    # No NCW transpose: the permutation is baked into W_comb's row order.
    # bf16 halves the HBM traffic the kernel re-reads.
    x_flat = merged.reshape(b, DS).astype(jnp.bfloat16)
    if DS_PAD != DS:
        x_flat = jnp.pad(x_flat, ((0, 0), (0, DS_PAD - DS)))
    return relcnn_pallas(x_flat, kparams)


def forward_reference(feature_tuples, params):
    """Unfused pure-JAX f32 reference matching the PyTorch module structure."""
    merged = build_merged(feature_tuples, params)
    x = jnp.transpose(merged, (0, 2, 1)).astype(jnp.float32)   # [B, D, S] NCW
    outs = []
    for bi, (k, wname) in enumerate(zip(WINDOW_SIZES,
                                        ["conv_w3", "conv_w2", "conv_w1"])):
        lp = SEQ_LEN - k + 1
        pooled = sum(x[:, :, j:j + lp] for j in range(k)) / k
        pad = k // 2
        padded = jnp.pad(pooled, ((0, 0), (0, 0), (pad, pad))) if pad else pooled
        lc = lp + 2 * pad - k + 1
        w = params[wname]
        out = sum(jnp.einsum("bdl,d->bl", padded[:, :, j:j + lc], w[:, j])
                  for j in range(k))
        outs.append(jnp.maximum(out + params["conv_b"][bi], 0.0))
    cat = jnp.concatenate(outs, axis=1)                     # [B, 22]
    h = jnp.maximum(cat @ params["fc1_w"] + params["fc1_b"], 0.0)
    return h @ params["fc2_w"] + params["fc2_b"]


def init_params(key):
    ks = jax.random.split(key, 10)
    s = 0.1
    return {
        "embed": jax.random.normal(ks[0], (VOCAB_SIZE, EMBED_DIM), jnp.float32) * s,
        "pos_embed": jax.random.normal(ks[1], (POS_VOCAB, POS_DIM), jnp.float32) * s,
        # Conv1d(total_dim, 1, kernel=k) weights stored as [D, k]; biases packed [3].
        "conv_w3": jax.random.normal(ks[2], (TOTAL_DIM, 3), jnp.float32) * s,
        "conv_w2": jax.random.normal(ks[3], (TOTAL_DIM, 2), jnp.float32) * s,
        "conv_w1": jax.random.normal(ks[4], (TOTAL_DIM, 1), jnp.float32) * s,
        "conv_b": jax.random.normal(ks[5], (3,), jnp.float32) * s,
        # Linear(total_cnn_out, 100) and Linear(100, class_size), stored [in, out].
        "fc1_w": jax.random.normal(ks[6], (TOTAL_CNN_OUT, FC_SIZE), jnp.float32) * s,
        "fc1_b": jax.random.normal(ks[7], (1, FC_SIZE), jnp.float32) * s,
        "fc2_w": jax.random.normal(ks[8], (FC_SIZE, CLASS_SIZE), jnp.float32) * s,
        "fc2_b": jax.random.normal(ks[9], (1, CLASS_SIZE), jnp.float32) * s,
    }


if __name__ == "__main__":
    key = jax.random.PRNGKey(0)
    params = init_params(key)
    kparams = build_kernel_params(params)        # one-time fold + pad of weights

    def make_features(b, subkey):
        text = jax.random.randint(subkey, (SEQ_LEN, b), 0, VOCAB_SIZE, jnp.int32)
        # entity features: tokens that appear in the text (shape [1, B])
        entity1 = text[2:3, :]
        entity2 = text[5:6, :]
        return [text, entity1, entity2]

    # TODO(synk): dropout (rates 0.1 / 0.5) is omitted — inference path only.

    # Small demo batch (module-scale shapes).
    feats = make_features(BATCH, jax.random.fold_in(key, 1))
    out = jax.block_until_ready(forward(feats, params, kparams))
    assert out.shape == (BATCH, CLASS_SIZE)
    assert bool(jnp.all(jnp.isfinite(out)))
    ref = forward_reference(feats, params)
    assert bool(jnp.allclose(out, ref, atol=2e-2, rtol=2e-2)), "mismatch vs ref (B=2)"

    # Awkward batch: exercises padding-aware tile choice and a multi-step grid.
    feats2 = make_features(300, jax.random.fold_in(key, 2))
    out2 = jax.block_until_ready(forward(feats2, params, kparams))
    assert out2.shape == (300, CLASS_SIZE)
    ref2 = forward_reference(feats2, params)
    assert bool(jnp.allclose(out2, ref2, atol=2e-2, rtol=2e-2)), "mismatch vs ref (B=300)"

    print("KERNEL_OK")
</pallas_src>

<mosaic_0001>
module attributes {stable_mosaic.version = 11 : i64} {
  func.func @relcnn_kernel(%arg0: i32, %arg1: memref<16x384xbf16, #tpu.memory_space<vmem>>, %arg2: memref<384x128xbf16, #tpu.memory_space<vmem>>, %arg3: memref<1x128xf32, #tpu.memory_space<vmem>>, %arg4: memref<128x128xbf16, #tpu.memory_space<vmem>>, %arg5: memref<1x128xf32, #tpu.memory_space<vmem>>, %arg6: memref<128x128xbf16, #tpu.memory_space<vmem>>, %arg7: memref<1x128xf32, #tpu.memory_space<vmem>>, %arg8: memref<16x128xf32, #tpu.memory_space<vmem>>) attributes {dimension_semantics = [#tpu.dimension_semantics<parallel>], iteration_bounds = array<i64: 1>, scalar_prefetch = 0 : i64, scratch_operands = 0 : i64, tpu.core_type = #tpu.core_type<tc>, window_params = [{transform_indices = @transform_0, window_bounds = array<i64: 16, 384>}, {pipeline_mode = #tpu.pipeline_mode<synchronous>, transform_indices = @transform_1, window_bounds = array<i64: 384, 128>}, {pipeline_mode = #tpu.pipeline_mode<synchronous>, transform_indices = @transform_2, window_bounds = array<i64: 1, 128>}, {pipeline_mode = #tpu.pipeline_mode<synchronous>, transform_indices = @transform_3, window_bounds = array<i64: 128, 128>}, {pipeline_mode = #tpu.pipeline_mode<synchronous>, transform_indices = @transform_4, window_bounds = array<i64: 1, 128>}, {pipeline_mode = #tpu.pipeline_mode<synchronous>, transform_indices = @transform_5, window_bounds = array<i64: 128, 128>}, {pipeline_mode = #tpu.pipeline_mode<synchronous>, transform_indices = @transform_6, window_bounds = array<i64: 1, 128>}, {transform_indices = @transform_7, window_bounds = array<i64: 16, 128>}]} {
    %c0 = arith.constant 0 : index
    %c0_0 = arith.constant 0 : index
    %0 = vector.load %arg1[%c0, %c0_0] : memref<16x384xbf16, #tpu.memory_space<vmem>>, vector<16x384xbf16>
    %c0_1 = arith.constant 0 : index
    %c0_2 = arith.constant 0 : index
    %1 = vector.load %arg2[%c0_1, %c0_2] : memref<384x128xbf16, #tpu.memory_space<vmem>>, vector<384x128xbf16>
    %cst = arith.constant dense<0.000000e+00> : vector<16x128xf32>
    %2 = tpu.matmul %0, %1, %cst {dimension_numbers = #tpu.dot_dimension_numbers<[1], [0], [0], [1], [0, 0, 1, 1], [], []>} : vector<16x384xbf16>, vector<384x128xbf16>, vector<16x128xf32> -> vector<16x128xf32>
    %c0_3 = arith.constant 0 : index
    %c0_4 = arith.constant 0 : index
    %3 = vector.load %arg3[%c0_3, %c0_4] : memref<1x128xf32, #tpu.memory_space<vmem>>, vector<1x128xf32>
    %4 = vector.broadcast %3 : vector<1x128xf32> to vector<16x128xf32>
    %5 = arith.addf %2, %4 : vector<16x128xf32>
    %cst_5 = arith.constant 0.000000e+00 : f32
    %6 = vector.broadcast %cst_5 : f32 to vector<16x128xf32>
    %7 = arith.maximumf %5, %6 : vector<16x128xf32>
    %8 = arith.truncf %7 : vector<16x128xf32> to vector<16x128xbf16>
    %c0_6 = arith.constant 0 : index
    %c0_7 = arith.constant 0 : index
    %9 = vector.load %arg4[%c0_6, %c0_7] : memref<128x128xbf16, #tpu.memory_space<vmem>>, vector<128x128xbf16>
    %cst_8 = arith.constant dense<0.000000e+00> : vector<16x128xf32>
    %10 = tpu.matmul %8, %9, %cst_8 {dimension_numbers = #tpu.dot_dimension_numbers<[1], [0], [0], [1], [0, 0, 1, 1], [], []>} : vector<16x128xbf16>, vector<128x128xbf16>, vector<16x128xf32> -> vector<16x128xf32>
    %c0_9 = arith.constant 0 : index
    %c0_10 = arith.constant 0 : index
    %11 = vector.load %arg5[%c0_9, %c0_10] : memref<1x128xf32, #tpu.memory_space<vmem>>, vector<1x128xf32>
    %12 = vector.broadcast %11 : vector<1x128xf32> to vector<16x128xf32>
    %13 = arith.addf %10, %12 : vector<16x128xf32>
    %cst_11 = arith.constant 0.000000e+00 : f32
    %14 = vector.broadcast %cst_11 : f32 to vector<16x128xf32>
    %15 = arith.maximumf %13, %14 : vector<16x128xf32>
    %16 = arith.truncf %15 : vector<16x128xf32> to vector<16x128xbf16>
    %c0_12 = arith.constant 0 : index
    %c0_13 = arith.constant 0 : index
    %17 = vector.load %arg6[%c0_12, %c0_13] : memref<128x128xbf16, #tpu.memory_space<vmem>>, vector<128x128xbf16>
    %cst_14 = arith.constant dense<0.000000e+00> : vector<16x128xf32>
    %18 = tpu.matmul %16, %17, %cst_14 {dimension_numbers = #tpu.dot_dimension_numbers<[1], [0], [0], [1], [0, 0, 1, 1], [], []>} : vector<16x128xbf16>, vector<128x128xbf16>, vector<16x128xf32> -> vector<16x128xf32>
    %c0_15 = arith.constant 0 : index
    %c0_16 = arith.constant 0 : index
    %19 = vector.load %arg7[%c0_15, %c0_16] : memref<1x128xf32, #tpu.memory_space<vmem>>, vector<1x128xf32>
    %20 = vector.broadcast %19 : vector<1x128xf32> to vector<16x128xf32>
    %21 = arith.addf %18, %20 : vector<16x128xf32>
    %c0_17 = arith.constant 0 : index
    %c0_18 = arith.constant 0 : index
    %22 = vector.load %arg8[%c0_17, %c0_18] : memref<16x128xf32, #tpu.memory_space<vmem>>, vector<16x128xf32>
    tpu.vector_store %arg8[%c0_17, %c0_18], %21 {strides = array<i32>} : memref<16x128xf32, #tpu.memory_space<vmem>>, vector<16x128xf32>,
    return
  }
  func.func @transform_0(%arg0: i32) -> (i32, i32) {
    %c0_i32 = arith.constant 0 : i32
    %c0_i32_0 = arith.constant 0 : i32
    return %arg0, %c0_i32 : i32, i32
  }
  func.func @transform_1(%arg0: i32) -> (i32, i32) {
    %c0_i32 = arith.constant 0 : i32
    %c0_i32_0 = arith.constant 0 : i32
    %c0_i32_1 = arith.constant 0 : i32
    return %c0_i32, %c0_i32_0 : i32, i32
  }
  func.func @transform_2(%arg0: i32) -> (i32, i32) {
    %c0_i32 = arith.constant 0 : i32
    %c0_i32_0 = arith.constant 0 : i32
    %c0_i32_1 = arith.constant 0 : i32
    return %c0_i32, %c0_i32_0 : i32, i32
  }
  func.func @transform_3(%arg0: i32) -> (i32, i32) {
    %c0_i32 = arith.constant 0 : i32
    %c0_i32_0 = arith.constant 0 : i32
    %c0_i32_1 = arith.constant 0 : i32
    return %c0_i32, %c0_i32_0 : i32, i32
  }
  func.func @transform_4(%arg0: i32) -> (i32, i32) {
    %c0_i32 = arith.constant 0 : i32
    %c0_i32_0 = arith.constant 0 : i32
    %c0_i32_1 = arith.constant 0 : i32
    return %c0_i32, %c0_i32_0 : i32, i32
  }
  func.func @transform_5(%arg0: i32) -> (i32, i32) {
    %c0_i32 = arith.constant 0 : i32
    %c0_i32_0 = arith.constant 0 : i32
    %c0_i32_1 = arith.constant 0 : i32
    return %c0_i32, %c0_i32_0 : i32, i32
  }
  func.func @transform_6(%arg0: i32) -> (i32, i32) {
    %c0_i32 = arith.constant 0 : i32
    %c0_i32_0 = arith.constant 0 : i32
    %c0_i32_1 = arith.constant 0 : i32
    return %c0_i32, %c0_i32_0 : i32, i32
  }
  func.func @transform_7(%arg0: i32) -> (i32, i32) {
    %c0_i32 = arith.constant 0 : i32
    %c0_i32_0 = arith.constant 0 : i32
    return %arg0, %c0_i32 : i32, i32
  }
}

</mosaic_0001>

<llo_original>
// kernel: tpu_custom_call.1
$region0: #{tpu_custom_call.1}
  #allocation0 [shape = 'u32[]', space=smem, size = 0x4, offset = 0x4, fixed_abs, tag = 'smem constant byte address 0x4 - core index']
  #allocation1 [shape = 'u32[144,128]{1,0:T(1,128)}', space=vmem, size = 0x12000, scoped, tag = 'internal scratch']
  %s0 = inlined_call_operand.hbm [shape: bf16[16,384], index: 0, kind: input, shape index: {}]
  %s1 = inlined_call_operand.hbm [shape: bf16[384,128], index: 1, kind: input, shape index: {}]
  %s2 = inlined_call_operand.vmem [shape: f32[1,128], index: 2, kind: input, shape index: {}]
  %s3 = inlined_call_operand.hbm [shape: bf16[128,128], index: 3, kind: input, shape index: {}]
  %s4 = inlined_call_operand.vmem [shape: f32[1,128], index: 4, kind: input, shape index: {}]
  %s5 = inlined_call_operand.hbm [shape: bf16[128,128], index: 5, kind: input, shape index: {}]
  %s6 = inlined_call_operand.vmem [shape: f32[1,128], index: 6, kind: input, shape index: {}]
  %s7 = inlined_call_operand.hbm [shape: f32[16,128], index: 7, kind: output, shape index: {}]
  %s8 = sld [smem:[#allocation0]]
  $region54: #{tpu_custom_call.1} parent=0
    _
  %s10 = ssub.s32 1, %s8
  %s11 = scalar_select 0, %s10, %s8
  $region1: #{tpu_custom_call.1} parent=0
    #allocation2 [shape = 'u8[12288]{0}', space=vmem, size = 0x3000, scoped, tag = 'input window, operand 0, single buffered']
    #allocation3 [shape = 's32[1]{0}', space=sflag, size = 0x4, scoped, tag = 'scoped memory for tpu_custom_call.1']
    #allocation4 [shape = 's32[1]{0}', space=sflag, size = 0x4, scoped, tag = 'scoped memory for tpu_custom_call.1']
    #allocation5 [shape = 'u8[98304]{0}', space=vmem, size = 0x18000, scoped, tag = 'input window, operand 1, single buffered']
    #allocation6 [shape = 's32[1]{0}', space=sflag, size = 0x4, scoped, tag = 'scoped memory for tpu_custom_call.1']
    #allocation7 [shape = 'u8[32768]{0}', space=vmem, size = 0x8000, scoped, tag = 'input window, operand 3, single buffered']
    #allocation8 [shape = 'u8[32768]{0}', space=vmem, size = 0x8000, scoped, tag = 'input window, operand 5, single buffered']
    #allocation9 [shape = 's32[1]{0}', space=sflag, size = 0x4, scoped, tag = 'scoped memory for tpu_custom_call.1']
    #allocation10 [shape = 'u8[8192]{0}', space=vmem, size = 0x2000, scoped, tag = 'output window, operand 0, single buffered']
    %12 = vsyncpa [#allocation3], 0
    %13 = vsyncpa [#allocation6], 0
    %14 = vsyncpa [#allocation9], 0
    %15 = vsyncpa [#allocation4], 0
    // Predicated region
    $region2: #{tpu_custom_call.1} parent=1 // pred_check
      _
    $region3: #{tpu_custom_call.1} parent=1 // pred_check_branch
      %17 = sbr.rel (0) target = $region5
    $region4: #{tpu_custom_call.1} parent=1 // pred_region
      %s19 = ssub.s32 384, 384
      %20 = vsyncadd [#allocation3], %s19
      %s21 = sshll.u32 [#allocation2], 4
      %s22 = int_to_ptr.vmem [resolvable:$true] %s21
      %27 = dma.hbm_to_vmem [thread:$0]  %s0, 384, %s22, [#allocation3], 192, 192, 12
    $region5: #{tpu_custom_call.1} parent=1 // pred_fallthru
      _
    // Predicated region
    $region6: #{tpu_custom_call.1} parent=1 // pred_check
      _
    $region7: #{tpu_custom_call.1} parent=1 // pred_check_branch
      %29 = sbr.rel (0) target = $region9
    $region8: #{tpu_custom_call.1} parent=1 // pred_region
      %s31 = ssub.s32 3072, 3072
      %32 = vsyncadd [#allocation6], %s31
      %s33 = sshll.u32 [#allocation5], 4
      %s34 = int_to_ptr.vmem [resolvable:$true] %s33
      %39 = dma.hbm_to_vmem [thread:$0]  %s1, 3072, %s34, [#allocation6], 64, 64, 4
    $region9: #{tpu_custom_call.1} parent=1 // pred_fallthru
      _
    // Predicated region
    $region10: #{tpu_custom_call.1} parent=1 // pred_check
      _
    $region11: #{tpu_custom_call.1} parent=1 // pred_check_branch
      %41 = sbr.rel (0) target = $region13
    $region12: #{tpu_custom_call.1} parent=1 // pred_region
      _
    $region13: #{tpu_custom_call.1} parent=1 // pred_fallthru
      _
    // Predicated region
    $region14: #{tpu_custom_call.1} parent=1 // pred_check
      _
    $region15: #{tpu_custom_call.1} parent=1 // pred_check_branch
      %43 = sbr.rel (0) target = $region17
    $region16: #{tpu_custom_call.1} parent=1 // pred_region
      %s45 = ssub.s32 1024, 1024
      %46 = vsyncadd [#allocation6], %s45
      %s47 = sshll.u32 [#allocation7], 4
      %s48 = int_to_ptr.vmem [resolvable:$true] %s47
      %53 = dma.hbm_to_vmem [thread:$0]  %s3, 1024, %s48, [#allocation6], 64, 64, 4
    $region17: #{tpu_custom_call.1} parent=1 // pred_fallthru
      _
    // Predicated region
    $region18: #{tpu_custom_call.1} parent=1 // pred_check
      _
    $region19: #{tpu_custom_call.1} parent=1 // pred_check_branch
      %55 = sbr.rel (0) target = $region21
    $region20: #{tpu_custom_call.1} parent=1 // pred_region
      _
    $region21: #{tpu_custom_call.1} parent=1 // pred_fallthru
      _
    // Predicated region
    $region22: #{tpu_custom_call.1} parent=1 // pred_check
      _
    $region23: #{tpu_custom_call.1} parent=1 // pred_check_branch
      %57 = sbr.rel (0) target = $region25
    $region24: #{tpu_custom_call.1} parent=1 // pred_region
      %s59 = ssub.s32 1024, 1024
      %60 = vsyncadd [#allocation9], %s59
      %s61 = sshll.u32 [#allocation8], 4
      %s62 = int_to_ptr.vmem [resolvable:$true] %s61
      %67 = dma.hbm_to_vmem [thread:$0]  %s5, 1024, %s62, [#allocation9], 64, 64, 4
    $region25: #{tpu_custom_call.1} parent=1 // pred_fallthru
      _
    // Predicated region
    $region26: #{tpu_custom_call.1} parent=1 // pred_check
      _
    $region27: #{tpu_custom_call.1} parent=1 // pred_check_branch
      %69 = sbr.rel (0) target = $region29
    $region28: #{tpu_custom_call.1} parent=1 // pred_region
      _
    $region29: #{tpu_custom_call.1} parent=1 // pred_fallthru
      _
    // Predicated region
    $region30: #{tpu_custom_call.1} parent=1 // pred_check
      _
    $region31: #{tpu_custom_call.1} parent=1 // pred_check_branch
      %71 = sbr.rel (0) target = $region33
    $region32: #{tpu_custom_call.1} parent=1 // pred_region
      %72 = dma.done [#allocation3], 384
    $region33: #{tpu_custom_call.1} parent=1 // pred_fallthru
      _
    // Predicated region
    $region34: #{tpu_custom_call.1} parent=1 // pred_check
      _
    $region35: #{tpu_custom_call.1} parent=1 // pred_check_branch
      %74 = sbr.rel (0) target = $region37
    $region36: #{tpu_custom_call.1} parent=1 // pred_region
      %75 = dma.done [#allocation6], 3072
    $region37: #{tpu_custom_call.1} parent=1 // pred_fallthru
      _
    // Predicated region
    $region38: #{tpu_custom_call.1} parent=1 // pred_check
      _
    $region39: #{tpu_custom_call.1} parent=1 // pred_check_branch
      %77 = sbr.rel (0) target = $region41
    $region40: #{tpu_custom_call.1} parent=1 // pred_region
      %78 = dma.done [#allocation6], 1024
    $region41: #{tpu_custom_call.1} parent=1 // pred_fallthru
      _
    // Predicated region
    $region42: #{tpu_custom_call.1} parent=1 // pred_check
      _
    $region43: #{tpu_custom_call.1} parent=1 // pred_check_branch
      %80 = sbr.rel (0) target = $region45
    $region44: #{tpu_custom_call.1} parent=1 // pred_region
      %81 = dma.done [#allocation9], 1024
    $region45: #{tpu_custom_call.1} parent=1 // pred_fallthru
      _
    %v83 = vld [vmem:[#allocation2] sm:$0xff]
    %v84 = vld [vmem:[#allocation2 + $0x8] sm:$0xf]
    %v85 = vld [vmem:[#allocation2 + $0xc] sm:$0xff]
    %v86 = vld [vmem:[#allocation2 + $0x14] sm:$0xf]
    %v87 = vld [vmem:[#allocation5] sm:$0xf]
    %v88 = vld [vmem:[#allocation5 + $0x4] sm:$0xf]
    %v89 = vld [vmem:[#allocation5 + $0x8] sm:$0xf]
    %v90 = vld [vmem:[#allocation5 + $0xc] sm:$0xf]
    %v91 = vld [vmem:[#allocation5 + $0x10] sm:$0xf]
    %v92 = vld [vmem:[#allocation5 + $0x14] sm:$0xf]
    %v93 = vld [vmem:[#allocation5 + $0x18] sm:$0xf]
    %v94 = vld [vmem:[#allocation5 + $0x1c] sm:$0xf]
    %v95 = vld [vmem:[#allocation5 + $0x20] sm:$0xf]
    %v96 = vld [vmem:[#allocation5 + $0x24] sm:$0xf]
    %v97 = vld [vmem:[#allocation5 + $0x28] sm:$0xf]
    %v98 = vld [vmem:[#allocation5 + $0x2c] sm:$0xf]
    %v99 = vld [vmem:[#allocation5 + $0x30] sm:$0xf]
    %v100 = vld [vmem:[#allocation5 + $0x34] sm:$0xf]
    %v101 = vld [vmem:[#allocation5 + $0x38] sm:$0xf]
    %v102 = vld [vmem:[#allocation5 + $0x3c] sm:$0xf]
    %v103 = vld [vmem:[#allocation5 + $0x40] sm:$0xf]
    %v104 = vld [vmem:[#allocation5 + $0x44] sm:$0xf]
    %v105 = vld [vmem:[#allocation5 + $0x48] sm:$0xf]
    %v106 = vld [vmem:[#allocation5 + $0x4c] sm:$0xf]
    %v107 = vld [vmem:[#allocation5 + $0x50] sm:$0xf]
    %v108 = vld [vmem:[#allocation5 + $0x54] sm:$0xf]
    %v109 = vld [vmem:[#allocation5 + $0x58] sm:$0xf]
    %v110 = vld [vmem:[#allocation5 + $0x5c] sm:$0xf]
    %v111 = vld [vmem:[#allocation5 + $0x60] sm:$0xf]
    %v112 = vld [vmem:[#allocation5 + $0x64] sm:$0xf]
    %v113 = vld [vmem:[#allocation5 + $0x68] sm:$0xf]
    %v114 = vld [vmem:[#allocation5 + $0x6c] sm:$0xf]
    %v115 = vld [vmem:[#allocation5 + $0x70] sm:$0xf]
    %v116 = vld [vmem:[#allocation5 + $0x74] sm:$0xf]
    %v117 = vld [vmem:[#allocation5 + $0x78] sm:$0xf]
    %v118 = vld [vmem:[#allocation5 + $0x7c] sm:$0xf]
    %v119 = vld [vmem:[#allocation5 + $0x80] sm:$0xf]
    %v120 = vld [vmem:[#allocation5 + $0x84] sm:$0xf]
    %v121 = vld [vmem:[#allocation5 + $0x88] sm:$0xf]
    %v122 = vld [vmem:[#allocation5 + $0x8c] sm:$0xf]
    %v123 = vld [vmem:[#allocation5 + $0x90] sm:$0xf]
    %v124 = vld [vmem:[#allocation5 + $0x94] sm:$0xf]
    %v125 = vld [vmem:[#allocation5 + $0x98] sm:$0xf]
    %v126 = vld [vmem:[#allocation5 + $0x9c] sm:$0xf]
    %v127 = vld [vmem:[#allocation5 + $0xa0] sm:$0xf]
    %v128 = vld [vmem:[#allocation5 + $0xa4] sm:$0xf]
    %v129 = vld [vmem:[#allocation5 + $0xa8] sm:$0xf]
    %v130 = vld [vmem:[#allocation5 + $0xac] sm:$0xf]
    %v131 = vld [vmem:[#allocation5 + $0xb0] sm:$0xf]
    %v132 = vld [vmem:[#allocation5 + $0xb4] sm:$0xf]
    %v133 = vld [vmem:[#allocation5 + $0xb8] sm:$0xf]
    %v134 = vld [vmem:[#allocation5 + $0xbc] sm:$0xf]
    %v135 = vld [vmem:[%s2] sm:$0x1]
    %v137 = vlaneseq
    %v138 = vshrl.u32 %v137, 7
    %v139 = vsub.s32 0, %v138
    %v140 = vrot.slane %v135, %v139
    %v146 = vunpack.c.l.b16 %v83
    %v147 = vunpack.c.h.b16 %v83
    %v148 = vunpack.c.l.b16 %v84
    %v149 = vunpack.c.l.b16 %v85
    %v150 = vunpack.c.h.b16 %v85
    %v151 = vunpack.c.l.b16 %v86
    %v152 = vpack.c.b16 %v149, %v146
    %v153 = vpack.c.b16 %v150, %v147
    %v154 = vpack.c.b16 %v151, %v148
    %v206 = vunpack.c.l.b16 %v87
    %v207 = vunpack.c.l.b16 %v88
    %v208 = vunpack.c.l.b16 %v89
    %v209 = vunpack.c.l.b16 %v90
    %v210 = vunpack.c.l.b16 %v91
    %v211 = vunpack.c.l.b16 %v92
    %v212 = vunpack.c.l.b16 %v93
    %v213 = vunpack.c.l.b16 %v94
    %v214 = vunpack.c.l.b16 %v95
    %v215 = vunpack.c.l.b16 %v96
    %v216 = vunpack.c.l.b16 %v97
    %v217 = vunpack.c.l.b16 %v98
    %v218 = vunpack.c.l.b16 %v99
    %v219 = vunpack.c.l.b16 %v100
    %v220 = vunpack.c.l.b16 %v101
    %v221 = vunpack.c.l.b16 %v102
    %v222 = vunpack.c.l.b16 %v103
    %v223 = vunpack.c.l.b16 %v104
    %v224 = vunpack.c.l.b16 %v105
    %v225 = vunpack.c.l.b16 %v106
    %v226 = vunpack.c.l.b16 %v107
    %v227 = vunpack.c.l.b16 %v108
    %v228 = vunpack.c.l.b16 %v109
    %v229 = vunpack.c.l.b16 %v110
    %v230 = vunpack.c.l.b16 %v111
    %v231 = vunpack.c.l.b16 %v112
    %v232 = vunpack.c.l.b16 %v113
    %v233 = vunpack.c.l.b16 %v114
    %v234 = vunpack.c.l.b16 %v115
    %v235 = vunpack.c.l.b16 %v116
    %v236 = vunpack.c.l.b16 %v117
    %v237 = vunpack.c.l.b16 %v118
    %v238 = vunpack.c.l.b16 %v119
    %v239 = vunpack.c.l.b16 %v120
    %v240 = vunpack.c.l.b16 %v121
    %v241 = vunpack.c.l.b16 %v122
    %v242 = vunpack.c.l.b16 %v123
    %v243 = vunpack.c.l.b16 %v124
    %v244 = vunpack.c.l.b16 %v125
    %v245 = vunpack.c.l.b16 %v126
    %v246 = vunpack.c.l.b16 %v127
    %v247 = vunpack.c.l.b16 %v128
    %v248 = vunpack.c.l.b16 %v129
    %v249 = vunpack.c.l.b16 %v130
    %v250 = vunpack.c.l.b16 %v131
    %v251 = vunpack.c.l.b16 %v132
    %v252 = vunpack.c.l.b16 %v133
    %v253 = vunpack.c.l.b16 %v134
    %v254 = vpack.c.b16 %v207, %v206
    %v255 = vpack.c.b16 %v209, %v208
    %v256 = vpack.c.b16 %v211, %v210
    %v257 = vpack.c.b16 %v213, %v212
    %v258 = vpack.c.b16 %v215, %v214
    %v259 = vpack.c.b16 %v217, %v216
    %v260 = vpack.c.b16 %v219, %v218
    %v261 = vpack.c.b16 %v221, %v220
    %v262 = vpack.c.b16 %v223, %v222
    %v263 = vpack.c.b16 %v225, %v224
    %v264 = vpack.c.b16 %v227, %v226
    %v265 = vpack.c.b16 %v229, %v228
    %v266 = vpack.c.b16 %v231, %v230
    %v267 = vpack.c.b16 %v233, %v232
    %v268 = vpack.c.b16 %v235, %v234
    %v269 = vpack.c.b16 %v237, %v236
    %v270 = vpack.c.b16 %v239, %v238
    %v271 = vpack.c.b16 %v241, %v240
    %v272 = vpack.c.b16 %v243, %v242
    %v273 = vpack.c.b16 %v245, %v244
    %v274 = vpack.c.b16 %v247, %v246
    %v275 = vpack.c.b16 %v249, %v248
    %v276 = vpack.c.b16 %v251, %v250
    %v277 = vpack.c.b16 %v253, %v252
    %302 = vmatprep.subr.bf16.mxu0 0
    %303 = vmatpush1.bf16.msra.mxu0 %v254
    %304 = vmatprep.subr.bf16.mxu0 0
    %305 = vmatpush1.bf16.msra.mxu0 %v255
    %306 = vmatprep.subr.bf16.mxu0 0
    %307 = vmatpush1.bf16.msra.mxu0 %v256
    %308 = vmatprep.subr.bf16.mxu0 0
    %309 = vmatpush1.bf16.msra.mxu0 %v257
    %310 = vmatprep.subr.bf16.mxu0 0
    %311 = vmatpush1.bf16.msra.mxu0 %v258
    %312 = vmatprep.subr.bf16.mxu0 0
    %313 = vmatpush1.bf16.msra.mxu0 %v259
    %314 = vmatprep.subr.bf16.mxu0 0
    %315 = vmatpush1.bf16.msra.mxu0 %v260
    %316 = vmatprep.subr.bf16.mxu0 0
    %317 = vmatpush1.bf16.msra.mxu0 %v261
    %318 = vmatprep.subr.bf16.mxu0 0
    %319 = vmatpush1.bf16.msra.mxu0 %v262
    %320 = vmatprep.subr.bf16.mxu0 0
    %321 = vmatpush1.bf16.msra.mxu0 %v263
    %322 = vmatprep.subr.bf16.mxu0 0
    %323 = vmatpush1.bf16.msra.mxu0 %v264
    %324 = vmatprep.subr.bf16.mxu0 0
    %325 = vmatpush1.bf16.msra.mxu0 %v265
    %326 = vmatprep.subr.bf16.mxu0 0
    %327 = vmatpush1.bf16.msra.mxu0 %v266
    %328 = vmatprep.subr.bf16.mxu0 0
    %329 = vmatpush1.bf16.msra.mxu0 %v267
    %330 = vmatprep.subr.bf16.mxu0 0
    %331 = vmatpush1.bf16.msra.mxu0 %v268
    %332 = vmatprep.subr.bf16.mxu0 0
    %333 = vmatpush1.bf16.msra.mxu0 %v269
    %334 = vmatprep.mubr.bf16.mxu0 %v153
    %335 = vmatmul.mubr.bf16.gmra.mrb[0].mxu0 %v152
    %v336 = vpop.f32.mrb[0].mxu0
    %v337 = vadd.f32 %v140, %v336
    %v338 = vpop.f32.mrb[0].mxu0
    %v339 = vpop.f32.mrb[0].mxu0
    %v340 = vadd.f32 %v140, %v339
    %v341 = vpop.f32.mrb[0].mxu0
    %342 = vdwg.mxu0
    %343 = vmatprep.subr.bf16.mxu0 0
    %344 = vmatpush1.bf16.msra.mxu0 %v270
    %345 = vmatprep.subr.bf16.mxu0 0
    %346 = vmatpush1.bf16.msra.mxu0 %v271
    %347 = vmatprep.subr.bf16.mxu0 0
    %348 = vmatpush1.bf16.msra.mxu0 %v272
    %349 = vmatprep.subr.bf16.mxu0 0
    %350 = vmatpush1.bf16.msra.mxu0 %v273
    %351 = vmatprep.subr.bf16.mxu0 0
    %352 = vmatpush1.bf16.msra.mxu0 %v274
    %353 = vmatprep.subr.bf16.mxu0 0
    %354 = vmatpush1.bf16.msra.mxu0 %v275
    %355 = vmatprep.subr.bf16.mxu0 0
    %356 = vmatpush1.bf16.msra.mxu0 %v276
    %357 = vmatprep.subr.bf16.mxu0 0
    %358 = vmatpush1.bf16.msra.mxu0 %v277
    %359 = vmatprep.subr.bf16.mxu0 0
    %360 = vmatpush1.bf16.msra.mxu0 0
    %361 = vmatprep.subr.bf16.mxu0 0
    %362 = vmatpush1.bf16.msra.mxu0 0
    %363 = vmatprep.subr.bf16.mxu0 0
    %364 = vmatpush1.bf16.msra.mxu0 0
    %365 = vmatprep.subr.bf16.mxu0 0
    %366 = vmatpush1.bf16.msra.mxu0 0
    %367 = vmatprep.subr.bf16.mxu0 0
    %368 = vmatpush1.bf16.msra.mxu0 0
    %369 = vmatprep.subr.bf16.mxu0 0
    %370 = vmatpush1.bf16.msra.mxu0 0
    %371 = vmatprep.subr.bf16.mxu0 0
    %372 = vmatpush1.bf16.msra.mxu0 0
    %373 = vmatprep.subr.bf16.mxu0 0
    %374 = vmatpush1.bf16.msra.mxu0 0
    %375 = vmatprep.mubr.bf16.mxu0 0
    %376 = vmatmul.mubr.bf16.gmra.mrb[0].mxu0 %v154
    %v377 = vpop.f32.mrb[0].mxu0
    %v378 = vadd.f32 %v337, %v377
    %v379 = vpop.f32.mrb[0].mxu0
    %v380 = vpop.f32.mrb[0].mxu0
    %v381 = vadd.f32 %v340, %v380
    %v382 = vpop.f32.mrb[0].mxu0
    %383 = vdwg.mxu0
    %v384 = vmax.f32 %v378, 0.0
    %v385 = vmax.f32 %v381, 0.0
    %v386 = vpack.c.bf16 %v385, %v384
    %v387 = vld [vmem:[#allocation7] sm:$0xf]
    %v388 = vld [vmem:[#allocation7 + $0x4] sm:$0xf]
    %v389 = vld [vmem:[#allocation7 + $0x8] sm:$0xf]
    %v390 = vld [vmem:[#allocation7 + $0xc] sm:$0xf]
    %v391 = vld [vmem:[#allocation7 + $0x10] sm:$0xf]
    %v392 = vld [vmem:[#allocation7 + $0x14] sm:$0xf]
    %v393 = vld [vmem:[#allocation7 + $0x18] sm:$0xf]
    %v394 = vld [vmem:[#allocation7 + $0x1c] sm:$0xf]
    %v395 = vld [vmem:[#allocation7 + $0x20] sm:$0xf]
    %v396 = vld [vmem:[#allocation7 + $0x24] sm:$0xf]
    %v397 = vld [vmem:[#allocation7 + $0x28] sm:$0xf]
    %v398 = vld [vmem:[#allocation7 + $0x2c] sm:$0xf]
    %v399 = vld [vmem:[#allocation7 + $0x30] sm:$0xf]
    %v400 = vld [vmem:[#allocation7 + $0x34] sm:$0xf]
    %v401 = vld [vmem:[#allocation7 + $0x38] sm:$0xf]
    %v402 = vld [vmem:[#allocation7 + $0x3c] sm:$0xf]
    %v403 = vld [vmem:[%s4] sm:$0x1]
    %v405 = vlaneseq
    %v406 = vshrl.u32 %v405, 7
    %v407 = vsub.s32 0, %v406
    %v408 = vrot.slane %v403, %v407
    %v426 = vunpack.c.l.b16 %v387
    %v427 = vunpack.c.l.b16 %v388
    %v428 = vunpack.c.l.b16 %v389
    %v429 = vunpack.c.l.b16 %v390
    %v430 = vunpack.c.l.b16 %v391
    %v431 = vunpack.c.l.b16 %v392
    %v432 = vunpack.c.l.b16 %v393
    %v433 = vunpack.c.l.b16 %v394
    %v434 = vunpack.c.l.b16 %v395
    %v435 = vunpack.c.l.b16 %v396
    %v436 = vunpack.c.l.b16 %v397
    %v437 = vunpack.c.l.b16 %v398
    %v438 = vunpack.c.l.b16 %v399
    %v439 = vunpack.c.l.b16 %v400
    %v440 = vunpack.c.l.b16 %v401
    %v441 = vunpack.c.l.b16 %v402
    %v442 = vpack.c.b16 %v427, %v426
    %v443 = vpack.c.b16 %v429, %v428
    %v444 = vpack.c.b16 %v431, %v430
    %v445 = vpack.c.b16 %v433, %v432
    %v446 = vpack.c.b16 %v435, %v434
    %v447 = vpack.c.b16 %v437, %v436
    %v448 = vpack.c.b16 %v439, %v438
    %v449 = vpack.c.b16 %v441, %v440
    %458 = vmatprep.subr.bf16.mxu0 0
    %459 = vmatpush1.bf16.msra.mxu0 %v442
    %460 = vmatprep.subr.bf16.mxu0 0
    %461 = vmatpush1.bf16.msra.mxu0 %v443
    %462 = vmatprep.subr.bf16.mxu0 0
    %463 = vmatpush1.bf16.msra.mxu0 %v444
    %464 = vmatprep.subr.bf16.mxu0 0
    %465 = vmatpush1.bf16.msra.mxu0 %v445
    %466 = vmatprep.subr.bf16.mxu0 0
    %467 = vmatpush1.bf16.msra.mxu0 %v446
    %468 = vmatprep.subr.bf16.mxu0 0
    %469 = vmatpush1.bf16.msra.mxu0 %v447
    %470 = vmatprep.subr.bf16.mxu0 0
    %471 = vmatpush1.bf16.msra.mxu0 %v448
    %472 = vmatprep.subr.bf16.mxu0 0
    %473 = vmatpush1.bf16.msra.mxu0 %v449
    %474 = vmatprep.subr.bf16.mxu0 0
    %475 = vmatpush1.bf16.msra.mxu0 0
    %476 = vmatprep.subr.bf16.mxu0 0
    %477 = vmatpush1.bf16.msra.mxu0 0
    %478 = vmatprep.subr.bf16.mxu0 0
    %479 = vmatpush1.bf16.msra.mxu0 0
    %480 = vmatprep.subr.bf16.mxu0 0
    %481 = vmatpush1.bf16.msra.mxu0 0
    %482 = vmatprep.subr.bf16.mxu0 0
    %483 = vmatpush1.bf16.msra.mxu0 0
    %484 = vmatprep.subr.bf16.mxu0 0
    %485 = vmatpush1.bf16.msra.mxu0 0
    %486 = vmatprep.subr.bf16.mxu0 0
    %487 = vmatpush1.bf16.msra.mxu0 0
    %488 = vmatprep.subr.bf16.mxu0 0
    %489 = vmatpush1.bf16.msra.mxu0 0
    %490 = vmatprep.mubr.bf16.mxu0 0
    %491 = vmatmul.mubr.bf16.gmra.mrb[0].mxu0 %v386
    %v492 = vpop.f32.mrb[0].mxu0
    %v493 = vadd.f32 %v408, %v492
    %v494 = vpop.f32.mrb[0].mxu0
    %v495 = vpop.f32.mrb[0].mxu0
    %v496 = vadd.f32 %v408, %v495
    %v497 = vpop.f32.mrb[0].mxu0
    %498 = vdwg.mxu0
    %v499 = vmax.f32 %v493, 0.0
    %v500 = vmax.f32 %v496, 0.0
    %v501 = vpack.c.bf16 %v500, %v499
    %v502 = vld [vmem:[#allocation8] sm:$0xf]
    %v503 = vld [vmem:[#allocation8 + $0x4] sm:$0xf]
    %v504 = vld [vmem:[#allocation8 + $0x8] sm:$0xf]
    %v505 = vld [vmem:[#allocation8 + $0xc] sm:$0xf]
    %v506 = vld [vmem:[#allocation8 + $0x10] sm:$0xf]
    %v507 = vld [vmem:[#allocation8 + $0x14] sm:$0xf]
    %v508 = vld [vmem:[#allocation8 + $0x18] sm:$0xf]
    %v509 = vld [vmem:[#allocation8 + $0x1c] sm:$0xf]
    %v510 = vld [vmem:[#allocation8 + $0x20] sm:$0xf]
    %v511 = vld [vmem:[#allocation8 + $0x24] sm:$0xf]
    %v512 = vld [vmem:[#allocation8 + $0x28] sm:$0xf]
    %v513 = vld [vmem:[#allocation8 + $0x2c] sm:$0xf]
    %v514 = vld [vmem:[#allocation8 + $0x30] sm:$0xf]
    %v515 = vld [vmem:[#allocation8 + $0x34] sm:$0xf]
    %v516 = vld [vmem:[#allocation8 + $0x38] sm:$0xf]
    %v517 = vld [vmem:[#allocation8 + $0x3c] sm:$0xf]
    %v518 = vld [vmem:[%s6] sm:$0x1]
    %v520 = vlaneseq
    %v521 = vshrl.u32 %v520, 7
    %v522 = vsub.s32 0, %v521
    %v523 = vrot.slane %v518, %v522
    %v541 = vunpack.c.l.b16 %v502
    %v542 = vunpack.c.l.b16 %v503
    %v543 = vunpack.c.l.b16 %v504
    %v544 = vunpack.c.l.b16 %v505
    %v545 = vunpack.c.l.b16 %v506
    %v546 = vunpack.c.l.b16 %v507
    %v547 = vunpack.c.l.b16 %v508
    %v548 = vunpack.c.l.b16 %v509
    %v549 = vunpack.c.l.b16 %v510
    %v550 = vunpack.c.l.b16 %v511
    %v551 = vunpack.c.l.b16 %v512
    %v552 = vunpack.c.l.b16 %v513
    %v553 = vunpack.c.l.b16 %v514
    %v554 = vunpack.c.l.b16 %v515
    %v555 = vunpack.c.l.b16 %v516
    %v556 = vunpack.c.l.b16 %v517
    %v557 = vpack.c.b16 %v542, %v541
    %v558 = vpack.c.b16 %v544, %v543
    %v559 = vpack.c.b16 %v546, %v545
    %v560 = vpack.c.b16 %v548, %v547
    %v561 = vpack.c.b16 %v550, %v549
    %v562 = vpack.c.b16 %v552, %v551
    %v563 = vpack.c.b16 %v554, %v553
    %v564 = vpack.c.b16 %v556, %v555
    %573 = vmatprep.subr.bf16.mxu0 0
    %574 = vmatpush1.bf16.msra.mxu0 %v557
    %575 = vmatprep.subr.bf16.mxu0 0
    %576 = vmatpush1.bf16.msra.mxu0 %v558
    %577 = vmatprep.subr.bf16.mxu0 0
    %578 = vmatpush1.bf16.msra.mxu0 %v559
    %579 = vmatprep.subr.bf16.mxu0 0
    %580 = vmatpush1.bf16.msra.mxu0 %v560
    %581 = vmatprep.subr.bf16.mxu0 0
    %582 = vmatpush1.bf16.msra.mxu0 %v561
    %583 = vmatprep.subr.bf16.mxu0 0
    %584 = vmatpush1.bf16.msra.mxu0 %v562
    %585 = vmatprep.subr.bf16.mxu0 0
    %586 = vmatpush1.bf16.msra.mxu0 %v563
    %587 = vmatprep.subr.bf16.mxu0 0
    %588 = vmatpush1.bf16.msra.mxu0 %v564
    %589 = vmatprep.subr.bf16.mxu0 0
    %590 = vmatpush1.bf16.msra.mxu0 0
    %591 = vmatprep.subr.bf16.mxu0 0
    %592 = vmatpush1.bf16.msra.mxu0 0
    %593 = vmatprep.subr.bf16.mxu0 0
    %594 = vmatpush1.bf16.msra.mxu0 0
    %595 = vmatprep.subr.bf16.mxu0 0
    %596 = vmatpush1.bf16.msra.mxu0 0
    %597 = vmatprep.subr.bf16.mxu0 0
    %598 = vmatpush1.bf16.msra.mxu0 0
    %599 = vmatprep.subr.bf16.mxu0 0
    %600 = vmatpush1.bf16.msra.mxu0 0
    %601 = vmatprep.subr.bf16.mxu0 0
    %602 = vmatpush1.bf16.msra.mxu0 0
    %603 = vmatprep.subr.bf16.mxu0 0
    %604 = vmatpush1.bf16.msra.mxu0 0
    %605 = vmatprep.mubr.bf16.mxu0 0
    %606 = vmatmul.mubr.bf16.gmra.mrb[0].mxu0 %v501
    %v607 = vpop.f32.mrb[0].mxu0
    %v608 = vadd.f32 %v523, %v607
    %v609 = vpop.f32.mrb[0].mxu0
    %v610 = vpop.f32.mrb[0].mxu0
    %v611 = vadd.f32 %v523, %v610
    %v612 = vpop.f32.mrb[0].mxu0
    %613 = vdwg.mxu0
    %614 = vst [vmem:[#allocation10] sm:$0xff] %v608
    %615 = vst [vmem:[#allocation10 + $0x8] sm:$0xff] %v611
    // Predicated region
    $region46: #{tpu_custom_call.1} parent=1 // pred_check
      _
    $region47: #{tpu_custom_call.1} parent=1 // pred_check_branch
      %617 = sbr.rel (0) target = $region49
    $region48: #{tpu_custom_call.1} parent=1 // pred_region
      %s619 = ssub.s32 256, 256
      %620 = vsyncadd [#allocation4], %s619
      %s621 = sshll.u32 [#allocation10], 4
      %s622 = int_to_ptr.vmem [resolvable:$true] %s621
      %627 = dma.vmem_to_hbm [thread:$0]  %s622, 256, %s7, [#allocation4], 128, 128, 8
    $region49: #{tpu_custom_call.1} parent=1 // pred_fallthru
      _
    // Predicated region
    $region50: #{tpu_custom_call.1} parent=1 // pred_check
      _
    $region51: #{tpu_custom_call.1} parent=1 // pred_check_branch
      %629 = sbr.rel (0) target = $region53
    $region52: #{tpu_custom_call.1} parent=1 // pred_region
      %630 = dma.done [#allocation4], 256
    $region53: #{tpu_custom_call.1} parent=1 // pred_fallthru
      _
    %631 = vsyncpa [#allocation3], 1
    %632 = vsyncpa [#allocation6], 1
    %633 = vsyncpa [#allocation9], 1
    %634 = vsyncpa [#allocation4], 1

</llo_original>
